<compile_context>
chip_gen: v5e
topology: v5e:2x2
jax: 0.10.0
libtpu: 0.0.40
codegen_flags: <defaults>
</compile_context>

<pallas_src>
import functools

import numpy as np

import jax
import jax.numpy as jnp
from jax.experimental import pallas as pl
from jax.experimental.pallas import tpu as pltpu

_EPS = 1e-6  # matches torch.nn.functional.pairwise_distance default eps


def _contrastive_loss_kernel(*refs, m, pack, tile_rows, g_rows, use_matmul,
                             edge_start_blk):
    if use_matmul:
        seg_ref, y1_ref, y2_ref, flag_ref, out_ref, acc_ref = refs
    else:
        y1_ref, y2_ref, flag_ref, out_ref, acc_ref = refs
        seg_ref = None

    t = pl.program_id(1)          # "arbitrary" tile axis (per-core stream)

    @pl.when(t == 0)
    def _init():
        acc_ref[...] = jnp.zeros_like(acc_ref)

    # Upcast after the (possibly bf16) DMA; all math in f32.
    y1 = y1_ref[...].astype(jnp.float32)
    y2 = y2_ref[...].astype(jnp.float32)
    diff = (y1 - y2) + _EPS                       # eps on the diff, as in torch
    sq = diff * diff                              # (tile_rows, lane), lane-dense VPU work

    if use_matmul:
        # Segmented feature reduction as a one-hot matmul on the idle MXU.
        # seg_ref is a resident constant input; its zero rows on padded lanes
        # drop the eps^2 terms of zero-padded feature columns.
        sq_sum = jnp.dot(sq, seg_ref[...],
                         preferred_element_type=jnp.float32)   # (tile_rows, pack)
    else:
        sq_sum = jnp.sum(sq, axis=-1, keepdims=True)           # (tile_rows, 1)

    flag = flag_ref[...].astype(jnp.float32)      # (tile_rows, pack)
    d = jnp.sqrt(sq_sum)                          # only needed for the margin branch
    per_example = (1.0 - flag) * sq_sum + flag * jnp.square(jnp.maximum(m - d, 0.0))

    if edge_start_blk is None:
        acc_ref[...] += jnp.sum(per_example, axis=0, keepdims=True)
    else:
        # Only edge blocks (partial last tile / clamped overhang blocks) pay
        # for the row mask; the steady-state path is a plain VPU accumulate.
        global_blk = pl.program_id(0) * pl.num_programs(1) + t

        @pl.when(global_blk < edge_start_blk)
        def _acc_full():
            acc_ref[...] += jnp.sum(per_example, axis=0, keepdims=True)

        @pl.when(global_blk >= edge_start_blk)
        def _acc_edge():
            rows = global_blk * tile_rows + jax.lax.broadcasted_iota(
                jnp.int32, (tile_rows, pack), 0)
            masked = jnp.where(rows < g_rows, per_example, 0.0)
            acc_ref[...] += jnp.sum(masked, axis=0, keepdims=True)

    @pl.when(t == pl.num_programs(1) - 1)
    def _finalize():
        out_ref[0, 0] = jnp.sum(acc_ref[...])     # per-core partial sum


def _vmem_capacity_bytes():
    try:
        info = pltpu.get_tpu_info()
    except Exception:
        return 128 * 1024 * 1024
    for attr in ("vmem_capacity_bytes", "vmem_bytes", "vmem_size_bytes"):
        val = getattr(info, attr, None)
        if val:
            return int(val)
    return 128 * 1024 * 1024


def contrastive_loss(y1, y2, flag, m=0.2, *, target_tile_bytes=None):
    """Pallas implementation of ContrastiveLoss.forward.

    y1, y2: (B, D) float32 / bfloat16 embeddings (bf16 halves HBM traffic)
    flag:   (B,)   0/1 values (0 = similar pair, 1 = dissimilar pair)
    returns scalar float32 loss
    """
    B, D = y1.shape
    assert y2.shape == (B, D) and flag.shape[0] == B

    # ---- lane packing / feature padding -----------------------------------
    if D < 128:
        d_pad = 1
        while d_pad < D:
            d_pad *= 2                      # next power of two -> divides 128
        pack = 128 // d_pad
        while pack > 1 and (B % pack) != 0:
            pack //= 2                      # pack must divide the batch
        if pack == 1:
            d_pad = D                       # padding only pays off when packing
    else:
        pack, d_pad = 1, D

    if d_pad != D:
        padding = ((0, 0), (0, d_pad - D))
        y1 = jnp.pad(y1, padding)
        y2 = jnp.pad(y2, padding)

    g_rows = B // pack
    lane = pack * d_pad
    y1p = y1.reshape(g_rows, lane)
    y2p = y2.reshape(g_rows, lane)
    flagp = flag.astype(jnp.float32).reshape(g_rows, pack)

    use_matmul = pack > 1
    if use_matmul:
        # Trace-time one-hot constant, passed as a small resident input
        # (block index constant across the grid -> fetched once, no per-step
        # iota / integer-divide / compare inside the kernel).
        seg_np = np.zeros((lane, pack), np.float32)
        for p in range(pack):
            seg_np[p * d_pad:p * d_pad + D, p] = 1.0   # padded lanes stay 0
        seg = jnp.asarray(seg_np)

    # ---- per-generation tile sizing ----------------------------------------
    itemsize = jnp.dtype(y1p.dtype).itemsize
    row_align = 16 if itemsize < 4 else 8              # bf16 sublane packing
    lane_vmem = ((lane + 127) // 128) * 128             # VMEM lane padding
    # Per packed row, per pipeline buffer: 2 embedding tiles + lane-padded f32 flag tile.
    per_row_bytes = 2 * lane_vmem * itemsize + 128 * 4

    vmem_cap = _vmem_capacity_bytes()
    if vmem_cap <= 64 * 1024 * 1024:                    # v7x-class (64 MiB VMEM)
        pipeline_budget, vmem_limit = 28 * 1024 * 1024, 48 * 1024 * 1024
    else:                                               # v5e / v6e (128 MiB VMEM)
        pipeline_budget, vmem_limit = 48 * 1024 * 1024, 64 * 1024 * 1024

    if target_tile_bytes is None:
        tile_rows = pipeline_budget // (2 * per_row_bytes)   # 2 pipeline buffers
    else:  # test knob: explicit per-embedding-input tile size
        tile_rows = target_tile_bytes // (lane_vmem * itemsize)
    tile_rows = max(row_align, (tile_rows // row_align) * row_align)
    if tile_rows >= g_rows:
        tile_rows = g_rows
    num_tiles = pl.cdiv(g_rows, tile_rows)

    # ---- 2-D grid: parallel core axis x arbitrary tile axis ----------------
    n_par = 2 if num_tiles >= 2 else 1
    inner_tiles = pl.cdiv(num_tiles, n_par)
    coverage = n_par * inner_tiles
    last_blk = num_tiles - 1

    if g_rows % tile_rows != 0:
        edge_start_blk = num_tiles - 1      # partial last tile (+ any overhang)
    elif coverage > num_tiles:
        edge_start_blk = num_tiles          # only clamped overhang blocks
    else:
        edge_start_blk = None               # no masking needed anywhere

    if coverage > num_tiles:
        def _blk(j, t):                     # clamp overhang block indices in-bounds
            return jnp.minimum(j * inner_tiles + t, last_blk)
    else:
        def _blk(j, t):
            return j * inner_tiles + t

    emb_spec = pl.BlockSpec((tile_rows, lane), lambda j, t: (_blk(j, t), 0))
    flag_spec = pl.BlockSpec((tile_rows, pack), lambda j, t: (_blk(j, t), 0))

    in_specs = [emb_spec, emb_spec, flag_spec]
    args = [y1p, y2p, flagp]
    if use_matmul:
        in_specs = [pl.BlockSpec((lane, pack), lambda j, t: (0, 0))] + in_specs
        args = [seg] + args

    kernel = functools.partial(
        _contrastive_loss_kernel,
        m=float(m), pack=pack, tile_rows=tile_rows, g_rows=g_rows,
        use_matmul=use_matmul, edge_start_blk=edge_start_blk)

    partials = pl.pallas_call(
        kernel,
        out_shape=jax.ShapeDtypeStruct((n_par, 1), jnp.float32),
        grid=(n_par, inner_tiles),
        in_specs=in_specs,
        out_specs=pl.BlockSpec((1, 1), lambda j, t: (j, 0),
                               memory_space=pltpu.MemorySpace.SMEM),
        scratch_shapes=[pltpu.VMEM((1, pack), jnp.float32)],
        compiler_params=pltpu.CompilerParams(
            dimension_semantics=("parallel", "arbitrary"),
            vmem_limit_bytes=int(vmem_limit)),
    )(*args)

    return jnp.sum(partials) * (1.0 / float(B))


def _reference_loss(y1, y2, flag, m=0.2):
    diff = y1.astype(jnp.float32) - y2.astype(jnp.float32) + _EPS
    d = jnp.sqrt(jnp.sum(diff * diff, axis=-1))
    return jnp.mean((1.0 - flag) * d ** 2
                    + flag * jnp.square(jnp.maximum(m - d, 0.0)))


if __name__ == "__main__":
    key = jax.random.PRNGKey(0)
    ks = jax.random.split(key, 12)

    def _check(y1, y2, flag, m=0.2, **kw):
        out = contrastive_loss(y1, y2, flag, m=m, **kw)
        jax.block_until_ready(out)
        ref = _reference_loss(y1, y2, flag.astype(jnp.float32), m=m)
        assert jnp.allclose(out, ref, rtol=1e-4, atol=1e-6), (out, ref)

    # 1) D divides 128 -> 4 examples packed per 128-lane row, single tile.
    _check(jax.random.normal(ks[0], (8, 32), jnp.float32),
           jax.random.normal(ks[1], (8, 32), jnp.float32),
           jax.random.bernoulli(ks[2], 0.5, (8,)).astype(jnp.float32))

    # 2) D = 48 -> features zero-padded to 64, 2 examples packed per row.
    _check(jax.random.normal(ks[3], (6, 48), jnp.float32),
           jax.random.normal(ks[4], (6, 48), jnp.float32),
           jnp.array([0, 1, 1, 0, 1, 0], jnp.float32))

    # 3) multi-tile: (2, inner) grid, block-index clamping, padded-row masking
    #    of the edge tiles (tiny per-tile byte target just to exercise the path).
    _check(jax.random.normal(ks[5], (200, 32), jnp.float32),
           jax.random.normal(ks[6], (200, 32), jnp.float32),
           jax.random.bernoulli(ks[7], 0.5, (200,)).astype(jnp.float32),
           target_tile_bytes=4096)

    # 4) bf16 embeddings (kernel is HBM-bound: halving bytes ~doubles throughput).
    _check(jax.random.normal(ks[8], (16, 64), jnp.float32).astype(jnp.bfloat16),
           jax.random.normal(ks[9], (16, 64), jnp.float32).astype(jnp.bfloat16),
           jax.random.bernoulli(ks[10], 0.5, (16,)).astype(jnp.float32))

    # 5) D >= 128 (no packing) -> plain row-wise sum path.
    _check(jax.random.normal(ks[11], (4, 160), jnp.float32),
           jax.random.normal(ks[0], (4, 160), jnp.float32),
           jnp.array([1, 0, 1, 0], jnp.float32))

    print("KERNEL_OK")
</pallas_src>

<mosaic_0001>
module attributes {stable_mosaic.version = 11 : i64} {
  func.func @_contrastive_loss_kernel(%arg0: i32, %arg1: i32, %arg2: memref<128x4xf32, #tpu.memory_space<vmem>>, %arg3: memref<2x128xf32, #tpu.memory_space<vmem>>, %arg4: memref<2x128xf32, #tpu.memory_space<vmem>>, %arg5: memref<2x4xf32, #tpu.memory_space<vmem>>, %arg6: memref<1x1xf32, #tpu.memory_space<smem>>, %arg7: memref<1x4xf32, #tpu.memory_space<vmem>>) attributes {dimension_semantics = [#tpu.dimension_semantics<parallel>, #tpu.dimension_semantics<arbitrary>], iteration_bounds = array<i64: 1, 1>, scalar_prefetch = 0 : i64, scratch_operands = 1 : i64, tpu.core_type = #tpu.core_type<tc>, window_params = [{pipeline_mode = #tpu.pipeline_mode<synchronous>, transform_indices = @transform_0, window_bounds = array<i64: 128, 4>}, {transform_indices = @transform_1, window_bounds = array<i64: 2, 128>}, {transform_indices = @transform_2, window_bounds = array<i64: 2, 128>}, {transform_indices = @transform_3, window_bounds = array<i64: 2, 4>}, {transform_indices = @transform_4, window_bounds = array<i64: 1, 1>}]} {
    %c0_i32 = arith.constant 0 : i32
    %0 = arith.cmpi eq, %arg1, %c0_i32 : i32
    %1 = arith.extui %0 : i1 to i32
    %c0_i32_0 = arith.constant 0 : i32
    %2 = arith.cmpi ne, %1, %c0_i32_0 : i32
    scf.if %2 {
      %cst_19 = arith.constant 0.000000e+00 : f32
      %31 = vector.broadcast %cst_19 : f32 to vector<1x4xf32>
      %c0_20 = arith.constant 0 : index
      %c0_21 = arith.constant 0 : index
      %32 = vector.load %arg7[%c0_20, %c0_21] : memref<1x4xf32, #tpu.memory_space<vmem>>, vector<1x4xf32>
      tpu.vector_store %arg7[%c0_20, %c0_21], %31 {strides = array<i32>} : memref<1x4xf32, #tpu.memory_space<vmem>>, vector<1x4xf32>,
    } else {
    }
    %c0 = arith.constant 0 : index
    %c0_1 = arith.constant 0 : index
    %3 = vector.load %arg3[%c0, %c0_1] : memref<2x128xf32, #tpu.memory_space<vmem>>, vector<2x128xf32>
    %c0_2 = arith.constant 0 : index
    %c0_3 = arith.constant 0 : index
    %4 = vector.load %arg4[%c0_2, %c0_3] : memref<2x128xf32, #tpu.memory_space<vmem>>, vector<2x128xf32>
    %5 = arith.subf %3, %4 : vector<2x128xf32>
    %cst = arith.constant 9.99999997E-7 : f32
    %6 = vector.broadcast %cst : f32 to vector<2x128xf32>
    %7 = arith.addf %5, %6 : vector<2x128xf32>
    %8 = arith.mulf %7, %7 : vector<2x128xf32>
    %c0_4 = arith.constant 0 : index
    %c0_5 = arith.constant 0 : index
    %9 = vector.load %arg2[%c0_4, %c0_5] : memref<128x4xf32, #tpu.memory_space<vmem>>, vector<128x4xf32>
    %cst_6 = arith.constant dense<0.000000e+00> : vector<2x4xf32>
    %10 = tpu.matmul %8, %9, %cst_6 {dimension_numbers = #tpu.dot_dimension_numbers<[1], [0], [0], [1], [0, 0, 1, 1], [], []>} : vector<2x128xf32>, vector<128x4xf32>, vector<2x4xf32> -> vector<2x4xf32>
    %c0_7 = arith.constant 0 : index
    %c0_8 = arith.constant 0 : index
    %11 = vector.load %arg5[%c0_7, %c0_8] : memref<2x4xf32, #tpu.memory_space<vmem>>, vector<2x4xf32>
    %12 = math.sqrt %10 : vector<2x4xf32>
    %cst_9 = arith.constant 1.000000e+00 : f32
    %13 = vector.broadcast %cst_9 : f32 to vector<2x4xf32>
    %14 = arith.subf %13, %11 : vector<2x4xf32>
    %15 = arith.mulf %14, %10 : vector<2x4xf32>
    %cst_10 = arith.constant 2.000000e-01 : f32
    %16 = vector.broadcast %cst_10 : f32 to vector<2x4xf32>
    %17 = arith.subf %16, %12 : vector<2x4xf32>
    %cst_11 = arith.constant 0.000000e+00 : f32
    %18 = vector.broadcast %cst_11 : f32 to vector<2x4xf32>
    %19 = arith.maximumf %17, %18 : vector<2x4xf32>
    %20 = arith.mulf %19, %19 : vector<2x4xf32>
    %21 = arith.mulf %11, %20 : vector<2x4xf32>
    %22 = arith.addf %15, %21 : vector<2x4xf32>
    %c0_12 = arith.constant 0 : index
    %c0_13 = arith.constant 0 : index
    %23 = vector.load %arg7[%c0_12, %c0_13] : memref<1x4xf32, #tpu.memory_space<vmem>>, vector<1x4xf32>
    %cst_14 = arith.constant dense<0.000000e+00> : vector<4xf32>
    %24 = vector.multi_reduction <add>, %22, %cst_14 [0] : vector<2x4xf32> to vector<4xf32>
    %25 = vector.shape_cast %24 : vector<4xf32> to vector<1x4xf32>
    %26 = arith.addf %23, %25 : vector<1x4xf32>
    %c0_15 = arith.constant 0 : index
    %c0_16 = arith.constant 0 : index
    %27 = vector.load %arg7[%c0_15, %c0_16] : memref<1x4xf32, #tpu.memory_space<vmem>>, vector<1x4xf32>
    tpu.vector_store %arg7[%c0_15, %c0_16], %26 {strides = array<i32>} : memref<1x4xf32, #tpu.memory_space<vmem>>, vector<1x4xf32>,
    %c0_i32_17 = arith.constant 0 : i32
    %28 = arith.cmpi eq, %arg1, %c0_i32_17 : i32
    %29 = arith.extui %28 : i1 to i32
    %c0_i32_18 = arith.constant 0 : i32
    %30 = arith.cmpi ne, %29, %c0_i32_18 : i32
    scf.if %30 {
      %c0_19 = arith.constant 0 : index
      %c0_20 = arith.constant 0 : index
      %31 = vector.load %arg7[%c0_19, %c0_20] : memref<1x4xf32, #tpu.memory_space<vmem>>, vector<1x4xf32>
      %32 = vector.shape_cast %31 : vector<1x4xf32> to vector<1x1x4xf32>
      %cst_21 = arith.constant dense<0.000000e+00> : vector<1xf32>
      %33 = vector.multi_reduction <add>, %32, %cst_21 [1, 2] : vector<1x1x4xf32> to vector<1xf32>
      %34 = vector.shape_cast %33 : vector<1xf32> to vector<1x1x1xf32>
      %35 = vector.extract %34[0, 0, 0] : f32 from vector<1x1x1xf32>
      %c0_22 = arith.constant 0 : index
      %c0_23 = arith.constant 0 : index
      %36 = memref.load %arg6[%c0_22, %c0_23] : memref<1x1xf32, #tpu.memory_space<smem>>
      memref.store %35, %arg6[%c0_22, %c0_23] : memref<1x1xf32, #tpu.memory_space<smem>>
    } else {
    }
    return
  }
  func.func @transform_0(%arg0: i32, %arg1: i32) -> (i32, i32) {
    %c0_i32 = arith.constant 0 : i32
    %c0_i32_0 = arith.constant 0 : i32
    %c0_i32_1 = arith.constant 0 : i32
    return %c0_i32, %c0_i32_0 : i32, i32
  }
  func.func @transform_1(%arg0: i32, %arg1: i32) -> (i32, i32) {
    %c1_i32 = arith.constant 1 : i32
    %0 = arith.muli %arg0, %c1_i32 : i32
    %1 = arith.addi %0, %arg1 : i32
    %c0_i32 = arith.constant 0 : i32
    %c0_i32_0 = arith.constant 0 : i32
    return %1, %c0_i32 : i32, i32
  }
  func.func @transform_2(%arg0: i32, %arg1: i32) -> (i32, i32) {
    %c1_i32 = arith.constant 1 : i32
    %0 = arith.muli %arg0, %c1_i32 : i32
    %1 = arith.addi %0, %arg1 : i32
    %c0_i32 = arith.constant 0 : i32
    %c0_i32_0 = arith.constant 0 : i32
    return %1, %c0_i32 : i32, i32
  }
  func.func @transform_3(%arg0: i32, %arg1: i32) -> (i32, i32) {
    %c1_i32 = arith.constant 1 : i32
    %0 = arith.muli %arg0, %c1_i32 : i32
    %1 = arith.addi %0, %arg1 : i32
    %c0_i32 = arith.constant 0 : i32
    %c0_i32_0 = arith.constant 0 : i32
    return %1, %c0_i32 : i32, i32
  }
  func.func @transform_4(%arg0: i32, %arg1: i32) -> (i32, i32) {
    %c0_i32 = arith.constant 0 : i32
    %c0_i32_0 = arith.constant 0 : i32
    return %arg0, %c0_i32 : i32, i32
  }
}

</mosaic_0001>

<llo_original>
// kernel: tpu_custom_call.1
$region0: #{tpu_custom_call.1}
  #allocation0 [shape = 'u32[]', space=smem, size = 0x4, offset = 0x4, fixed_abs, tag = 'smem constant byte address 0x4 - core index']
  #allocation1 [shape = 'u32[72,128]{1,0:T(1,128)}', space=vmem, size = 0x9000, scoped, tag = 'internal scratch']
  #allocation2 [shape = 'f32[1,4]{1,0:T(1,128)}', space=vmem, size = 0x200, scoped, tag = 'scratch operand']
  %s0 = inlined_call_operand.vmem [shape: f32[128,4], index: 0, kind: input, shape index: {}]
  %s1 = inlined_call_operand.vmem [shape: f32[2,128], index: 1, kind: input, shape index: {}]
  %s2 = inlined_call_operand.vmem [shape: f32[2,128], index: 2, kind: input, shape index: {}]
  %s3 = inlined_call_operand.vmem [shape: f32[2,4], index: 3, kind: input, shape index: {}]
  %s4 = inlined_call_operand.hbm [shape: f32[1,1], index: 4, kind: output, shape index: {}]
  %s5 = sld [smem:[#allocation0]]
  $region34: #{tpu_custom_call.1} parent=0
    _
  %s7 = ssub.s32 1, %s5
  %s8 = scalar_select 0, %s7, %s5
  $region1: #{tpu_custom_call.1} parent=0
    #allocation3 [shape = 'u8[512]{0}', space=smem, size = 0x200, scoped, tag = 'output window, operand 0, single buffered']
    #allocation4 [shape = 's32[1]{0}', space=sflag, size = 0x4, scoped, tag = 'scoped memory for tpu_custom_call.1']
    %9 = vsyncpa [#allocation4], 0
    // Predicated region
    $region2: #{tpu_custom_call.1} parent=1 // pred_check
      _
    $region3: #{tpu_custom_call.1} parent=1 // pred_check_branch
      %11 = sbr.rel (0) target = $region5
    $region4: #{tpu_custom_call.1} parent=1 // pred_region
      _
    $region5: #{tpu_custom_call.1} parent=1 // pred_fallthru
      _
    // Predicated region
    $region6: #{tpu_custom_call.1} parent=1 // pred_check
      _
    $region7: #{tpu_custom_call.1} parent=1 // pred_check_branch
      %13 = sbr.rel (0) target = $region9
    $region8: #{tpu_custom_call.1} parent=1 // pred_region
      %s14 = sadd.s32 0, 0
      %p15 = scmp.lt.s32.totalorder %s14, 0
      %s16 = scalar_select %p15, %s14, 0
      %s17 = smul.addr %s16, 2
      %s18 = scalar_lea.vmem %s1, %s17
      %s19 = sadd.s32 0, 0
    $region9: #{tpu_custom_call.1} parent=1 // pred_fallthru
      _
    // Predicated region
    $region10: #{tpu_custom_call.1} parent=1 // pred_check
      _
    $region11: #{tpu_custom_call.1} parent=1 // pred_check_branch
      %21 = sbr.rel (0) target = $region13
    $region12: #{tpu_custom_call.1} parent=1 // pred_region
      %s22 = sadd.s32 0, 0
      %p23 = scmp.lt.s32.totalorder %s22, 0
      %s24 = scalar_select %p23, %s22, 0
      %s25 = smul.addr %s24, 2
      %s26 = scalar_lea.vmem %s2, %s25
      %s27 = sadd.s32 0, 0
    $region13: #{tpu_custom_call.1} parent=1 // pred_fallthru
      _
    // Predicated region
    $region14: #{tpu_custom_call.1} parent=1 // pred_check
      _
    $region15: #{tpu_custom_call.1} parent=1 // pred_check_branch
      %29 = sbr.rel (0) target = $region17
    $region16: #{tpu_custom_call.1} parent=1 // pred_region
      %s30 = sadd.s32 0, 0
      %p31 = scmp.lt.s32.totalorder %s30, 0
      %s32 = scalar_select %p31, %s30, 0
      %s33 = smul.addr %s32, 2
      %s34 = scalar_lea.vmem %s3, %s33
      %s35 = sadd.s32 0, 0
    $region17: #{tpu_custom_call.1} parent=1 // pred_fallthru
      _
    %s36 = sadd.s32 0, 0
    %p37 = scmp.lt.s32.totalorder %s36, 0
    %s38 = scalar_select %p37, %s36, 0
    %s39 = smul.addr %s38, 2
    %s40 = scalar_lea.vmem %s1, %s39
    %s41 = sadd.s32 0, 0
    %p42 = scmp.lt.s32.totalorder %s41, 0
    %s43 = scalar_select %p42, %s41, 0
    %s44 = smul.addr %s43, 2
    %s45 = scalar_lea.vmem %s2, %s44
    %s46 = sadd.s32 0, 0
    %p47 = scmp.lt.s32.totalorder %s46, 0
    %s48 = scalar_select %p47, %s46, 0
    %s49 = smul.addr %s48, 2
    %s50 = scalar_lea.vmem %s3, %s49
    %s51 = sadd.s32 0, 0
    %p52 = scmp.lt.s32.totalorder %s51, 0
    %s53 = scalar_select %p52, %s51, 0
    %s54 = smul.addr %s53, 2
    %s55 = scalar_lea.vmem %s1, %s54
    %s56 = sadd.s32 0, 0
    %s57 = sadd.s32 0, 0
    %p58 = scmp.lt.s32.totalorder %s57, 0
    %s59 = scalar_select %p58, %s57, 0
    %s60 = smul.addr %s59, 2
    %s61 = scalar_lea.vmem %s2, %s60
    %s62 = sadd.s32 0, 0
    %s63 = sadd.s32 0, 0
    %p64 = scmp.lt.s32.totalorder %s63, 0
    %s65 = scalar_select %p64, %s63, 0
    %s66 = smul.addr %s65, 2
    %s67 = scalar_lea.vmem %s3, %s66
    %s68 = sadd.s32 0, 0
    %p69 = scmp.eq.s32.totalorder 0, 0
    // Predicated region
    $region18: #{tpu_custom_call.1} parent=1 // pred_check
      %p70 = pneg %p69
    $region19: #{tpu_custom_call.1} parent=1 // pred_check_branch
      %72 = sbr.rel (%p70) target = $region21
    $region20: #{tpu_custom_call.1} parent=1 // pred_region
      %vm73 = vcmask 24576
      %74 = vst.msk [vmem:[#allocation2] sm:$0x1] %vm73, 0.0
    $region21: #{tpu_custom_call.1} parent=1 // pred_fallthru
      _
    %v75 = vld [vmem:[%s55] sm:$0x3]
    %v76 = vld [vmem:[%s61] sm:$0x3]
    %v77 = vsub.f32 %v75, %v76
    %v78 = vadd.f32 %v77, 1e-06
    %v79 = vmul.f32 %v78, %v78
    %v80 = vld [vmem:[%s0] sm:$0xff]
    %v81 = vld [vmem:[%s0 + $0x8] sm:$0xff]
    %v82 = vld [vmem:[%s0 + $0x10] sm:$0xff]
    %v83 = vld [vmem:[%s0 + $0x18] sm:$0xff]
    %v84 = vld [vmem:[%s0 + $0x20] sm:$0xff]
    %v85 = vld [vmem:[%s0 + $0x28] sm:$0xff]
    %v86 = vld [vmem:[%s0 + $0x30] sm:$0xff]
    %v87 = vld [vmem:[%s0 + $0x38] sm:$0xff]
    %v88 = vld [vmem:[%s0 + $0x40] sm:$0xff]
    %v89 = vld [vmem:[%s0 + $0x48] sm:$0xff]
    %v90 = vld [vmem:[%s0 + $0x50] sm:$0xff]
    %v91 = vld [vmem:[%s0 + $0x58] sm:$0xff]
    %v92 = vld [vmem:[%s0 + $0x60] sm:$0xff]
    %v93 = vld [vmem:[%s0 + $0x68] sm:$0xff]
    %v94 = vld [vmem:[%s0 + $0x70] sm:$0xff]
    %v95 = vld [vmem:[%s0 + $0x78] sm:$0xff]
    %96 = vmatpush.msra.mxu0 %v95
    %97 = vmatpush.msra.mxu0 %v94
    %98 = vmatpush.msra.mxu0 %v93
    %99 = vmatpush.msra.mxu0 %v92
    %100 = vmatpush.msra.mxu0 %v91
    %101 = vmatpush.msra.mxu0 %v90
    %102 = vmatpush.msra.mxu0 %v89
    %103 = vmatpush.msra.mxu0 %v88
    %104 = vmatpush.msra.mxu0 %v87
    %105 = vmatpush.msra.mxu0 %v86
    %106 = vmatpush.msra.mxu0 %v85
    %107 = vmatpush.msra.mxu0 %v84
    %108 = vmatpush.msra.mxu0 %v83
    %109 = vmatpush.msra.mxu0 %v82
    %110 = vmatpush.msra.mxu0 %v81
    %111 = vmatpush.msra.mxu0 %v80
    %112 = vmatmul.f32.gmra.mxu0 %v79
    %v113 = vpop.f32.mrf.mxu0
    %v114 = vadd.f32 0.0, %v113
    %115 = vdwg.mxu0
    %v116 = vld [vmem:[%s67] sm:$0x3]
    %v117 = vrsqrt.pop %v114
    %v118 = vmul.f32 %v117, %v114
    %v119 = vmul.f32 %v118, %v117
    %v120 = vmul.f32 0.5, %v119
    %v121 = vsub.f32 1.5, %v120
    %v122 = vmul.f32 %v117, %v121
    %v123 = vmul.f32 %v114, %v122
    %vm124 = vcmp.eq.f32.partialorder %v114, inf
    %v125 = vsel %vm124, %v114, %v123
    %vm126 = vcmp.eq.f32.partialorder %v114, 0.0
    %v127 = vand.u32 %v114, 2147483648
    %v128 = vsel %vm126, %v127, %v125
    %v129 = vsub.f32 1.0, %v116
    %v130 = vmul.f32 %v129, %v114
    %v131 = vsub.f32 0.2, %v128
    %v132 = vmax.f32 %v131, 0.0
    %v133 = vmul.f32 %v132, %v132
    %v134 = vmul.f32 %v116, %v133
    %v135 = vadd.f32 %v130, %v134
    %v136 = vld [vmem:[#allocation2] sm:$0x1]
    %vm137 = vcmask 25600
    %v138 = vsel %vm137, %v135, 0.0
    %v139 = vrot.slane %v138, 4
    %v140 = vadd.f32 %v138, %v139
    %v141 = vrot.slane %v140, 2
    %v142 = vadd.f32 %v140, %v141
    %v143 = vrot.slane %v142, 1
    %v144 = vadd.f32 %v142, %v143
    %v145 = vadd.f32 %v136, %v144
    %vm146 = vcmask 24576
    %147 = vst.msk [vmem:[#allocation2] sm:$0x1] %vm146, %v145
    // Predicated region
    $region22: #{tpu_custom_call.1} parent=1 // pred_check
      %p148 = pneg %p69
    $region23: #{tpu_custom_call.1} parent=1 // pred_check_branch
      %150 = sbr.rel (%p148) target = $region25
    $region24: #{tpu_custom_call.1} parent=1 // pred_region
      %v151 = vld [vmem:[#allocation2] sm:$0x1]
      %v152 = vsel %vm146, %v151, 0.0
      %153 = vadd.xlane.f32.xlu0 %v152
      %v154 = vpop.xlane.xlu0 %153
      %v155 = vrot.slane %v154, 4
      %v156 = vadd.f32 %v154, %v155
      %v157 = vrot.slane %v156, 2
      %v158 = vadd.f32 %v156, %v157
      %v159 = vrot.slane %v158, 1
      %v160 = vadd.f32 %v158, %v159
      %s161 = vtos %v160
      %s162 = scalar_lea.smem [#allocation3], 0
      %163 = sst [smem:[%s162]] %s161
    $region25: #{tpu_custom_call.1} parent=1 // pred_fallthru
      _
    // Predicated region
    $region26: #{tpu_custom_call.1} parent=1 // pred_check
      _
    $region27: #{tpu_custom_call.1} parent=1 // pred_check_branch
      %165 = sbr.rel (0) target = $region29
    $region28: #{tpu_custom_call.1} parent=1 // pred_region
      %167 = vsyncadd [#allocation4], 0
      %s169 = sshll.u32 %s4, 4
      %s170 = int_to_ptr.hbm [resolvable:$true] %s169
      %172 = dma.smem_to_hbm [#allocation3], 16, %s170, [#allocation4]
    $region29: #{tpu_custom_call.1} parent=1 // pred_fallthru
      _
    // Predicated region
    $region30: #{tpu_custom_call.1} parent=1 // pred_check
      _
    $region31: #{tpu_custom_call.1} parent=1 // pred_check_branch
      %174 = sbr.rel (0) target = $region33
    $region32: #{tpu_custom_call.1} parent=1 // pred_region
      %176 = dma.done [#allocation4], 16
    $region33: #{tpu_custom_call.1} parent=1 // pred_fallthru
      _
    %177 = sfence
    %178 = vsyncpa [#allocation4], 1

</llo_original>
